<compile_context>
chip_gen: v5e
topology: v5e:2x2
jax: 0.10.0
libtpu: 0.0.40
codegen_flags: <defaults>
</compile_context>

<pallas_src>
import functools

import jax
import jax.numpy as jnp
from jax.experimental import pallas as pl
from jax.experimental.pallas import tpu as pltpu


_VMEM_LIMIT = 48 * 1024 * 1024   # fits under v7x physical 64 MiB, > default scoped limit elsewhere
_LN_EPS = 1e-5


def _tile(dim, cap, align):
    """Full dim if it fits; else the largest divisor of dim <= cap, preferring
    multiples of 2*align (256-wide MXU cadence on v6e/v7x), then of align."""
    if dim <= cap:
        return dim
    for a in (2 * align, align):
        t = (cap // a) * a
        while t >= a:
            if dim % t == 0:
                return t
            t -= a
    return dim   # fallback: single full-dim block (always legal)


# ----------------------------- Pallas kernels ------------------------------

def _matmul_bias_kernel(x_ref, w_ref, b_ref, o_ref, acc_ref, *, activation):
    @pl.when(pl.program_id(2) == 0)
    def _():
        acc_ref[...] = jnp.zeros_like(acc_ref)

    acc_ref[...] += jnp.dot(x_ref[...], w_ref[...], preferred_element_type=jnp.float32)

    @pl.when(pl.program_id(2) == pl.num_programs(2) - 1)
    def _():
        y = acc_ref[...] + b_ref[...].astype(jnp.float32)
        if activation == "gelu":
            # TODO(synk): HF Roberta uses exact erf-GELU; tanh approximation used for robust Mosaic lowering.
            y = jax.nn.gelu(y, approximate=True)
        o_ref[...] = y.astype(o_ref.dtype)


def linear(x2d, w, b, activation=None, tm_cap=512, tn_cap=512, tk_cap=512):
    """Tiled [M,K] @ [K,N] + b with fused bias (and optional GELU) epilogue."""
    M, K = x2d.shape
    N = w.shape[1]
    tm = _tile(M, tm_cap, 16)
    tn = _tile(N, tn_cap, 128)
    tk = _tile(K, tk_cap, 128)
    grid = (M // tm, N // tn, K // tk)
    return pl.pallas_call(
        functools.partial(_matmul_bias_kernel, activation=activation),
        out_shape=jax.ShapeDtypeStruct((M, N), x2d.dtype),
        grid_spec=pltpu.PrefetchScalarGridSpec(
            num_scalar_prefetch=0,
            grid=grid,
            in_specs=[
                pl.BlockSpec((tm, tk), lambda i, j, k: (i, k)),
                pl.BlockSpec((tk, tn), lambda i, j, k: (k, j)),
                pl.BlockSpec((1, tn), lambda i, j, k: (0, j)),
            ],
            out_specs=pl.BlockSpec((tm, tn), lambda i, j, k: (i, j)),
            scratch_shapes=[pltpu.VMEM((tm, tn), jnp.float32)],
        ),
        compiler_params=pltpu.CompilerParams(
            dimension_semantics=("parallel", "parallel", "arbitrary"),
            vmem_limit_bytes=_VMEM_LIMIT),
    )(x2d, w, b.reshape(1, N))


def _matmul_residual_ln_kernel(x_ref, w_ref, b_ref, r_ref, g_ref, beta_ref,
                               o_ref, acc_ref, *, eps):
    @pl.when(pl.program_id(1) == 0)
    def _():
        acc_ref[...] = jnp.zeros_like(acc_ref)

    acc_ref[...] += jnp.dot(x_ref[...], w_ref[...], preferred_element_type=jnp.float32)

    @pl.when(pl.program_id(1) == pl.num_programs(1) - 1)
    def _():
        h = (acc_ref[...] + b_ref[...].astype(jnp.float32)
             + r_ref[...].astype(jnp.float32))
        mu = jnp.mean(h, axis=-1, keepdims=True)
        var = jnp.mean((h - mu) * (h - mu), axis=-1, keepdims=True)
        inv = jax.lax.rsqrt(var + eps)
        o_ref[...] = ((h - mu) * inv * g_ref[...].astype(jnp.float32)
                      + beta_ref[...].astype(jnp.float32)).astype(o_ref.dtype)


def linear_residual_layernorm(x2d, w, b, residual2d, gamma, beta,
                              tm_cap=512, tk_cap=512):
    """Tiled matmul with fused bias + residual add + LayerNorm epilogue (full-N tiles)."""
    M, K = x2d.shape
    N = w.shape[1]
    tm = _tile(M, tm_cap, 16)
    tk = _tile(K, tk_cap, 128)
    grid = (M // tm, K // tk)
    return pl.pallas_call(
        functools.partial(_matmul_residual_ln_kernel, eps=_LN_EPS),
        out_shape=jax.ShapeDtypeStruct((M, N), x2d.dtype),
        grid_spec=pltpu.PrefetchScalarGridSpec(
            num_scalar_prefetch=0,
            grid=grid,
            in_specs=[
                pl.BlockSpec((tm, tk), lambda i, k: (i, k)),
                pl.BlockSpec((tk, N), lambda i, k: (k, 0)),
                pl.BlockSpec((1, N), lambda i, k: (0, 0)),
                pl.BlockSpec((tm, N), lambda i, k: (i, 0)),
                pl.BlockSpec((1, N), lambda i, k: (0, 0)),
                pl.BlockSpec((1, N), lambda i, k: (0, 0)),
            ],
            out_specs=pl.BlockSpec((tm, N), lambda i, k: (i, 0)),
            scratch_shapes=[pltpu.VMEM((tm, N), jnp.float32)],
        ),
        compiler_params=pltpu.CompilerParams(
            dimension_semantics=("parallel", "arbitrary"),
            vmem_limit_bytes=_VMEM_LIMIT),
    )(x2d, w, b.reshape(1, N), residual2d, gamma.reshape(1, N), beta.reshape(1, N))


def _layernorm_kernel(x_ref, g_ref, b_ref, o_ref, *, eps):
    h = x_ref[...].astype(jnp.float32)
    mu = jnp.mean(h, axis=-1, keepdims=True)
    var = jnp.mean((h - mu) * (h - mu), axis=-1, keepdims=True)
    inv = jax.lax.rsqrt(var + eps)
    o_ref[...] = ((h - mu) * inv * g_ref[...].astype(jnp.float32)
                  + b_ref[...].astype(jnp.float32)).astype(o_ref.dtype)


def layernorm(x2d, gamma, beta):
    """LayerNorm over the hidden (last) axis (no residual: embedding stage)."""
    M, H = x2d.shape
    tm = _tile(M, 512, 16)
    return pl.pallas_call(
        functools.partial(_layernorm_kernel, eps=_LN_EPS),
        out_shape=jax.ShapeDtypeStruct((M, H), x2d.dtype),
        grid_spec=pltpu.PrefetchScalarGridSpec(
            num_scalar_prefetch=0,
            grid=(M // tm,),
            in_specs=[
                pl.BlockSpec((tm, H), lambda i: (i, 0)),
                pl.BlockSpec((1, H), lambda i: (0, 0)),
                pl.BlockSpec((1, H), lambda i: (0, 0)),
            ],
            out_specs=pl.BlockSpec((tm, H), lambda i: (i, 0)),
        ),
        compiler_params=pltpu.CompilerParams(
            dimension_semantics=("parallel",),
            vmem_limit_bytes=_VMEM_LIMIT),
    )(x2d, gamma.reshape(1, H), beta.reshape(1, H))


def _attention_kernel(qkv_ref, m_ref, o_ref, *, nH, Dh, H, scale):
    """One grid step = one batch element, all heads.

    qkv_ref block: (1, S, 3H) bf16 with columns [Q | K | V], heads contiguous.
    m_ref   block: (1, 1, S) f32 additive mask row.
    o_ref   block: (1, S, H) — lane-dense context for this batch element."""
    mask = m_ref[0]                                                  # (1, S) f32
    ctx_heads = []
    for h in range(nH):                                              # static, small nH
        q = qkv_ref[0, :, h * Dh:(h + 1) * Dh]                       # (S, Dh)
        k = qkv_ref[0, :, H + h * Dh:H + (h + 1) * Dh]               # (S, Dh)
        v = qkv_ref[0, :, 2 * H + h * Dh:2 * H + (h + 1) * Dh]       # (S, Dh)
        # Contraction on both last dims (K transposed by Mosaic); only a small
        # XLU cost per step and avoids any HBM-level relayout of K.
        s = jax.lax.dot_general(q, k, (((1,), (1,)), ((), ())),
                                preferred_element_type=jnp.float32)  # (S, S) f32
        s = s * scale + mask                                         # row broadcast
        s = s - jnp.max(s, axis=-1, keepdims=True)
        p = jnp.exp(s)
        p = p * pl.reciprocal(jnp.sum(p, axis=-1, keepdims=True), approx=True)
        ctx_heads.append(
            jnp.dot(p.astype(v.dtype), v,
                    preferred_element_type=jnp.float32).astype(o_ref.dtype))
    # single lane-dense (S, H) store
    o_ref[0] = jnp.concatenate(ctx_heads, axis=-1)


def attention(qkv3d, add_mask, *, nH, Dh, H, scale):
    """qkv3d: [B, S, 3H] fused QKV activations; add_mask: [B, 1, S] (f32).

    Returns context [B, S, H] (heads already merged, lane-dense)."""
    B, S, _ = qkv3d.shape
    return pl.pallas_call(
        functools.partial(_attention_kernel, nH=nH, Dh=Dh, H=H, scale=scale),
        out_shape=jax.ShapeDtypeStruct((B, S, H), qkv3d.dtype),
        grid_spec=pltpu.PrefetchScalarGridSpec(
            num_scalar_prefetch=0,
            grid=(B,),
            in_specs=[
                pl.BlockSpec((1, S, 3 * H), lambda b: (b, 0, 0)),
                pl.BlockSpec((1, 1, S), lambda b: (b, 0, 0)),
            ],
            out_specs=pl.BlockSpec((1, S, H), lambda b: (b, 0, 0)),
        ),
        compiler_params=pltpu.CompilerParams(
            dimension_semantics=("parallel",),
            vmem_limit_bytes=_VMEM_LIMIT),
    )(qkv3d, add_mask)


def _classify_kernel(h_ref, w_ref, b_ref, o_ref):
    # Single grid step: batched matmul over the layer axis.
    logits = jax.lax.dot_general(
        h_ref[...], w_ref[...],
        dimension_numbers=(((2,), (1,)), ((0,), (0,))),
        preferred_element_type=jnp.float32) + b_ref[...].astype(jnp.float32)
    o_ref[...] = logits


def sliced_classification(cls_hidden, w, b):
    """All per-layer heads in one grid step; lane-dense (128-padded) output.
    cls_hidden: [L, B, H]; w: [L, H, n_labels]; b: [L, n_labels]."""
    L, B, H = cls_hidden.shape
    n_labels = w.shape[-1]
    n_pad = ((n_labels + 127) // 128) * 128
    w_p = jnp.pad(w, ((0, 0), (0, 0), (0, n_pad - n_labels)))
    b_p = jnp.pad(b, ((0, 0), (0, n_pad - n_labels))).reshape(L, 1, n_pad).astype(jnp.float32)
    out = pl.pallas_call(
        _classify_kernel,
        out_shape=jax.ShapeDtypeStruct((L, B, n_pad), jnp.float32),
        grid_spec=pltpu.PrefetchScalarGridSpec(
            num_scalar_prefetch=0,
            grid=(1,),
            in_specs=[
                pl.BlockSpec((L, B, H), lambda i: (0, 0, 0)),
                pl.BlockSpec((L, H, n_pad), lambda i: (0, 0, 0)),
                pl.BlockSpec((L, 1, n_pad), lambda i: (0, 0, 0)),
            ],
            out_specs=pl.BlockSpec((L, B, n_pad), lambda i: (0, 0, 0)),
        ),
        compiler_params=pltpu.CompilerParams(
            dimension_semantics=("arbitrary",),
            vmem_limit_bytes=_VMEM_LIMIT),
    )(cls_hidden.astype(w_p.dtype), w_p, b_p)
    return out[:, :, :n_labels]


# --------------------------- parameter construction -------------------------

def init_params(key, *, vocab, max_pos, hidden, num_heads, inter, num_layers,
                num_labels, dtype=jnp.bfloat16):
    keys = iter(jax.random.split(key, 8 + 8 * num_layers + 2))

    def dense(k, shape):
        return (jax.random.normal(k, shape, jnp.float32) * 0.02).astype(dtype)

    params = {
        'num_heads': num_heads,
        'word_emb': dense(next(keys), (vocab, hidden)),
        'pos_emb': dense(next(keys), (max_pos, hidden)),
        'type_emb': dense(next(keys), (2, hidden)),
        'emb_ln_g': jnp.ones((hidden,), jnp.float32),
        'emb_ln_b': jnp.zeros((hidden,), jnp.float32),
        'layers': [],
    }
    for _ in range(num_layers):
        params['layers'].append({
            # fused QKV projection: [H, 3H] (= concat of wq|wk|wv columns)
            'w_qkv': dense(next(keys), (hidden, 3 * hidden)),
            'b_qkv': jnp.zeros((3 * hidden,), jnp.float32),
            'wo': dense(next(keys), (hidden, hidden)),
            'bo': jnp.zeros((hidden,), jnp.float32),
            'ln1_g': jnp.ones((hidden,), jnp.float32),
            'ln1_b': jnp.zeros((hidden,), jnp.float32),
            'wi': dense(next(keys), (hidden, inter)),
            'bi': jnp.zeros((inter,), jnp.float32),
            'wout': dense(next(keys), (inter, hidden)),
            'bout': jnp.zeros((hidden,), jnp.float32),
            'ln2_g': jnp.ones((hidden,), jnp.float32),
            'ln2_b': jnp.zeros((hidden,), jnp.float32),
        })
    params['cls_w'] = dense(next(keys), (num_layers, hidden, num_labels))
    params['cls_b'] = jnp.zeros((num_layers, num_labels), jnp.float32)
    return params


# -------------------------------- forward ----------------------------------

def sliced_roberta_forward(params, input_ids, attention_mask):
    B, S = input_ids.shape
    H = params['word_emb'].shape[1]
    nH = params['num_heads']
    Dh = H // nH
    L = params['cls_w'].shape[0]
    act_dtype = params['word_emb'].dtype

    # --- embeddings (gathers in plain JAX; LayerNorm in Pallas) ---
    mask_i = attention_mask.astype(jnp.int32)
    # padding-aware roberta position ids (padding_idx = 1)
    pos_ids = jnp.cumsum(mask_i, axis=1) * mask_i + 1
    emb = (params['word_emb'][input_ids]
           + params['pos_emb'][pos_ids]
           + params['type_emb'][0][None, None]).astype(act_dtype)
    h = layernorm(emb.reshape(B * S, H), params['emb_ln_g'], params['emb_ln_b'])

    cls_states = [h.reshape(B, S, H)[:, 0, :]]

    # additive mask kept as a compact [B, 1, S] row, broadcast inside the kernel
    add_mask = ((1.0 - attention_mask.astype(jnp.float32)) * -1e9).reshape(B, 1, S)
    scale = 1.0 / float(Dh) ** 0.5

    # --- encoder layers (post-LN, Roberta-style) ---
    for lyr in params['layers']:
        qkv = linear(h, lyr['w_qkv'], lyr['b_qkv'])                  # [B*S, 3H]
        # heads are split/merged purely via in-kernel column windows: no XLA
        # transposes, only free reshapes between [B*S, X] and [B, S, X].
        ctx = attention(qkv.reshape(B, S, 3 * H), add_mask,
                        nH=nH, Dh=Dh, H=H, scale=scale)              # [B, S, H]
        ctx2d = ctx.reshape(B * S, H)
        # attention output dense + residual + LN1 (fused epilogue)
        h = linear_residual_layernorm(ctx2d, lyr['wo'], lyr['bo'], h,
                                      lyr['ln1_g'], lyr['ln1_b'])
        # FFN: intermediate dense + GELU (fused), output dense + residual + LN2 (fused)
        inter = linear(h, lyr['wi'], lyr['bi'], activation="gelu")
        h = linear_residual_layernorm(inter, lyr['wout'], lyr['bout'], h,
                                      lyr['ln2_g'], lyr['ln2_b'])
        cls_states.append(h.reshape(B, S, H)[:, 0, :])

    # PyTorch zip(new_hidden_states, classification_layers) truncates to the
    # first L hidden states (embedding output + layers 0..L-2); reproduce that.
    cls = jnp.stack(cls_states, axis=0)[:L]                          # [L, B, H]
    return sliced_classification(cls, params['cls_w'], params['cls_b'])  # [L, B, num_labels]


# ---------------------------------- main ------------------------------------

if __name__ == "__main__":
    VOCAB, MAX_POS = 100, 64
    B, S, H, NHEADS, INTER = 2, 8, 32, 4, 64
    NUM_LAYERS, NUM_LABELS = 4, 2

    key = jax.random.PRNGKey(0)
    k_params, k_ids = jax.random.split(key)

    params = init_params(k_params, vocab=VOCAB, max_pos=MAX_POS, hidden=H,
                         num_heads=NHEADS, inter=INTER,
                         num_layers=NUM_LAYERS, num_labels=NUM_LABELS)

    input_ids = jax.random.randint(k_ids, (B, S), 0, VOCAB, dtype=jnp.int32)
    attention_mask = jnp.ones((B, S), dtype=jnp.int32)

    logits = sliced_roberta_forward(params, input_ids, attention_mask)
    jax.block_until_ready(logits)

    assert logits.shape == (NUM_LAYERS, B, NUM_LABELS), logits.shape
    assert bool(jnp.all(jnp.isfinite(logits)))
    print("KERNEL_OK")
</pallas_src>

<mosaic_0001>
module attributes {stable_mosaic.version = 11 : i64} {
  func.func @_layernorm_kernel(%arg0: i32, %arg1: memref<16x32xbf16, #tpu.memory_space<vmem>>, %arg2: memref<1x32xf32, #tpu.memory_space<vmem>>, %arg3: memref<1x32xf32, #tpu.memory_space<vmem>>, %arg4: memref<16x32xbf16, #tpu.memory_space<vmem>>) attributes {dimension_semantics = [#tpu.dimension_semantics<parallel>], iteration_bounds = array<i64: 1>, scalar_prefetch = 0 : i64, scratch_operands = 0 : i64, tpu.core_type = #tpu.core_type<tc>, window_params = [{transform_indices = @transform_0, window_bounds = array<i64: 16, 32>}, {pipeline_mode = #tpu.pipeline_mode<synchronous>, transform_indices = @transform_1, window_bounds = array<i64: 1, 32>}, {pipeline_mode = #tpu.pipeline_mode<synchronous>, transform_indices = @transform_2, window_bounds = array<i64: 1, 32>}, {transform_indices = @transform_3, window_bounds = array<i64: 16, 32>}]} {
    %c0 = arith.constant 0 : index
    %c0_0 = arith.constant 0 : index
    %0 = vector.load %arg1[%c0, %c0_0] : memref<16x32xbf16, #tpu.memory_space<vmem>>, vector<16x32xbf16>
    %1 = arith.extf %0 : vector<16x32xbf16> to vector<16x32xf32>
    %cst = arith.constant dense<0.000000e+00> : vector<16xf32>
    %2 = vector.multi_reduction <add>, %1, %cst [1] : vector<16x32xf32> to vector<16xf32>
    %3 = vector.shape_cast %2 : vector<16xf32> to vector<16x1xf32>
    %cst_1 = arith.constant 3.200000e+01 : f32
    %4 = vector.broadcast %cst_1 : f32 to vector<16x1xf32>
    %5 = arith.divf %3, %4 : vector<16x1xf32>
    %6 = vector.broadcast %5 : vector<16x1xf32> to vector<16x32xf32>
    %7 = arith.subf %1, %6 : vector<16x32xf32>
    %8 = vector.broadcast %5 : vector<16x1xf32> to vector<16x32xf32>
    %9 = arith.subf %1, %8 : vector<16x32xf32>
    %10 = arith.mulf %7, %9 : vector<16x32xf32>
    %cst_2 = arith.constant dense<0.000000e+00> : vector<16xf32>
    %11 = vector.multi_reduction <add>, %10, %cst_2 [1] : vector<16x32xf32> to vector<16xf32>
    %12 = vector.shape_cast %11 : vector<16xf32> to vector<16x1xf32>
    %cst_3 = arith.constant 3.200000e+01 : f32
    %13 = vector.broadcast %cst_3 : f32 to vector<16x1xf32>
    %14 = arith.divf %12, %13 : vector<16x1xf32>
    %cst_4 = arith.constant 9.99999974E-6 : f32
    %15 = vector.broadcast %cst_4 : f32 to vector<16x1xf32>
    %16 = arith.addf %14, %15 : vector<16x1xf32>
    %17 = math.rsqrt %16 : vector<16x1xf32>
    %18 = vector.broadcast %5 : vector<16x1xf32> to vector<16x32xf32>
    %19 = arith.subf %1, %18 : vector<16x32xf32>
    %20 = vector.broadcast %17 : vector<16x1xf32> to vector<16x32xf32>
    %21 = arith.mulf %19, %20 : vector<16x32xf32>
    %c0_5 = arith.constant 0 : index
    %c0_6 = arith.constant 0 : index
    %22 = vector.load %arg2[%c0_5, %c0_6] : memref<1x32xf32, #tpu.memory_space<vmem>>, vector<1x32xf32>
    %23 = vector.broadcast %22 : vector<1x32xf32> to vector<16x32xf32>
    %24 = arith.mulf %21, %23 : vector<16x32xf32>
    %c0_7 = arith.constant 0 : index
    %c0_8 = arith.constant 0 : index
    %25 = vector.load %arg3[%c0_7, %c0_8] : memref<1x32xf32, #tpu.memory_space<vmem>>, vector<1x32xf32>
    %26 = vector.broadcast %25 : vector<1x32xf32> to vector<16x32xf32>
    %27 = arith.addf %24, %26 : vector<16x32xf32>
    %28 = arith.truncf %27 : vector<16x32xf32> to vector<16x32xbf16>
    %c0_9 = arith.constant 0 : index
    %c0_10 = arith.constant 0 : index
    %29 = vector.load %arg4[%c0_9, %c0_10] : memref<16x32xbf16, #tpu.memory_space<vmem>>, vector<16x32xbf16>
    tpu.vector_store %arg4[%c0_9, %c0_10], %28 {strides = array<i32>} : memref<16x32xbf16, #tpu.memory_space<vmem>>, vector<16x32xbf16>,
    return
  }
  func.func @transform_0(%arg0: i32) -> (i32, i32) {
    %c0_i32 = arith.constant 0 : i32
    %c0_i32_0 = arith.constant 0 : i32
    return %arg0, %c0_i32 : i32, i32
  }
  func.func @transform_1(%arg0: i32) -> (i32, i32) {
    %c0_i32 = arith.constant 0 : i32
    %c0_i32_0 = arith.constant 0 : i32
    %c0_i32_1 = arith.constant 0 : i32
    return %c0_i32, %c0_i32_0 : i32, i32
  }
  func.func @transform_2(%arg0: i32) -> (i32, i32) {
    %c0_i32 = arith.constant 0 : i32
    %c0_i32_0 = arith.constant 0 : i32
    %c0_i32_1 = arith.constant 0 : i32
    return %c0_i32, %c0_i32_0 : i32, i32
  }
  func.func @transform_3(%arg0: i32) -> (i32, i32) {
    %c0_i32 = arith.constant 0 : i32
    %c0_i32_0 = arith.constant 0 : i32
    return %arg0, %c0_i32 : i32, i32
  }
}

</mosaic_0001>

<llo_original>
// kernel: tpu_custom_call.1
$region0: #{tpu_custom_call.1}
  #allocation0 [shape = 'u32[]', space=smem, size = 0x4, offset = 0x4, fixed_abs, tag = 'smem constant byte address 0x4 - core index']
  #allocation1 [shape = 'u32[72,128]{1,0:T(1,128)}', space=vmem, size = 0x9000, scoped, tag = 'internal scratch']
  %s0 = inlined_call_operand.hbm [shape: bf16[16,32], index: 0, kind: input, shape index: {}]
  %s1 = inlined_call_operand.hbm [shape: f32[1,32], index: 1, kind: input, shape index: {}]
  %s2 = inlined_call_operand.vmem [shape: f32[1,32], index: 2, kind: input, shape index: {}]
  %s3 = inlined_call_operand.hbm [shape: bf16[16,32], index: 3, kind: output, shape index: {}]
  %s4 = sld [smem:[#allocation0]]
  $region30: #{tpu_custom_call.1} parent=0
    _
  %s6 = ssub.s32 1, %s4
  %s7 = scalar_select 0, %s6, %s4
  $region1: #{tpu_custom_call.1} parent=0
    #allocation2 [shape = 'u8[4096]{0}', space=vmem, size = 0x1000, scoped, tag = 'input window, operand 0, single buffered']
    #allocation3 [shape = 's32[1]{0}', space=sflag, size = 0x4, scoped, tag = 'scoped memory for tpu_custom_call.1']
    #allocation4 [shape = 's32[1]{0}', space=sflag, size = 0x4, scoped, tag = 'scoped memory for tpu_custom_call.1']
    #allocation5 [shape = 'u8[512]{0}', space=vmem, size = 0x400, scoped, tag = 'input window, operand 1, single buffered']
    #allocation6 [shape = 's32[1]{0}', space=sflag, size = 0x4, scoped, tag = 'scoped memory for tpu_custom_call.1']
    #allocation7 [shape = 'u8[4096]{0}', space=vmem, size = 0x1000, scoped, tag = 'output window, operand 0, single buffered']
    %8 = vsyncpa [#allocation3], 0
    %9 = vsyncpa [#allocation6], 0
    %10 = vsyncpa [#allocation4], 0
    // Predicated region
    $region2: #{tpu_custom_call.1} parent=1 // pred_check
      _
    $region3: #{tpu_custom_call.1} parent=1 // pred_check_branch
      %12 = sbr.rel (0) target = $region5
    $region4: #{tpu_custom_call.1} parent=1 // pred_region
      %14 = vsyncadd [#allocation3], 0
      %s15 = sshll.u32 %s0, 4
      %s16 = int_to_ptr.hbm [resolvable:$true] %s15
      %s17 = sshll.u32 [#allocation2], 4
      %s18 = int_to_ptr.vmem [resolvable:$true] %s17
      %23 = dma.hbm_to_vmem [thread:$0]  %s16, 128, %s18, [#allocation3], 64, 64, 4
    $region5: #{tpu_custom_call.1} parent=1 // pred_fallthru
      _
    // Predicated region
    $region6: #{tpu_custom_call.1} parent=1 // pred_check
      _
    $region7: #{tpu_custom_call.1} parent=1 // pred_check_branch
      %25 = sbr.rel (0) target = $region9
    $region8: #{tpu_custom_call.1} parent=1 // pred_region
      %27 = vsyncadd [#allocation6], 0
      %s29 = sshll.u32 %s1, 4
      %s30 = int_to_ptr.hbm [resolvable:$true] %s29
      %s31 = sshll.u32 [#allocation5], 4
      %s32 = int_to_ptr.vmem [resolvable:$true] %s31
      %34 = dma.hbm_to_vmem [thread:$0]  %s30, 16, %s32, [#allocation6]
    $region9: #{tpu_custom_call.1} parent=1 // pred_fallthru
      _
    // Predicated region
    $region10: #{tpu_custom_call.1} parent=1 // pred_check
      _
    $region11: #{tpu_custom_call.1} parent=1 // pred_check_branch
      %36 = sbr.rel (0) target = $region13
    $region12: #{tpu_custom_call.1} parent=1 // pred_region
      _
    $region13: #{tpu_custom_call.1} parent=1 // pred_fallthru
      _
    // Predicated region
    $region14: #{tpu_custom_call.1} parent=1 // pred_check
      _
    $region15: #{tpu_custom_call.1} parent=1 // pred_check_branch
      %38 = sbr.rel (0) target = $region17
    $region16: #{tpu_custom_call.1} parent=1 // pred_region
      %40 = dma.done [#allocation3], 128
    $region17: #{tpu_custom_call.1} parent=1 // pred_fallthru
      _
    // Predicated region
    $region18: #{tpu_custom_call.1} parent=1 // pred_check
      _
    $region19: #{tpu_custom_call.1} parent=1 // pred_check_branch
      %42 = sbr.rel (0) target = $region21
    $region20: #{tpu_custom_call.1} parent=1 // pred_region
      %44 = dma.done [#allocation6], 16
    $region21: #{tpu_custom_call.1} parent=1 // pred_fallthru
      _
    %v45 = vld [vmem:[#allocation2] sm:$0xf]
    %v46 = vld [vmem:[#allocation2 + $0x4] sm:$0xf]
    %v47 = vunpack.c.l.bf16 %v45
    %v48 = vunpack.c.l.bf16 %v46
    %vm49 = vcmask 261120
    %v50 = vsel %vm49, %v47, 0.0
    %51 = vadd.xlane.f32.xlu0 %v50
    %v52 = vpop.xlane.xlu0 %51
    %v53 = vsel %vm49, %v48, 0.0
    %54 = vadd.xlane.f32.xlu0 %v53
    %v55 = vpop.xlane.xlu0 %54
    %v56 = vrcp.pop 32.0
    %v57 = vmul.f32 32.0, %v56
    %v58 = vsub.f32 1.0, %v57
    %v59 = vmul.f32 %v56, %v58
    %v60 = vadd.f32 %v56, %v59
    %vm61 = vweird.f32 %v56
    %v62 = vsel %vm61, %v56, %v60
    %v63 = vmul.f32 %v52, %v62
    %v64 = vmul.f32 %v55, %v62
    %v65 = vsub.f32 %v47, %v63
    %v66 = vsub.f32 %v48, %v64
    %v67 = vmul.f32 %v65, %v65
    %v68 = vmul.f32 %v66, %v66
    %v69 = vsel %vm49, %v67, 0.0
    %70 = vadd.xlane.f32.xlu0 %v69
    %v71 = vpop.xlane.xlu0 %70
    %v72 = vsel %vm49, %v68, 0.0
    %73 = vadd.xlane.f32.xlu0 %v72
    %v74 = vpop.xlane.xlu0 %73
    %v75 = vmul.f32 %v71, %v62
    %v76 = vmul.f32 %v74, %v62
    %v77 = vadd.f32 %v75, 1e-05
    %v78 = vadd.f32 %v76, 1e-05
    %v79 = vrsqrt.pop %v77
    %v80 = vmul.f32 %v79, %v77
    %v81 = vmul.f32 %v80, %v79
    %v82 = vmul.f32 0.5, %v81
    %v83 = vsub.f32 1.5, %v82
    %v84 = vmul.f32 %v79, %v83
    %vm85 = vweird.f32 %v77
    %vm86 = vweird.f32 %v79
    %vm87 = vmor %vm85, %vm86
    %v88 = vsel %vm87, %v79, %v84
    %v89 = vrsqrt.pop %v78
    %v90 = vmul.f32 %v89, %v78
    %v91 = vmul.f32 %v90, %v89
    %v92 = vmul.f32 0.5, %v91
    %v93 = vsub.f32 1.5, %v92
    %v94 = vmul.f32 %v89, %v93
    %vm95 = vweird.f32 %v78
    %vm96 = vweird.f32 %v89
    %vm97 = vmor %vm95, %vm96
    %v98 = vsel %vm97, %v89, %v94
    %v99 = vmul.f32 %v65, %v88
    %v100 = vmul.f32 %v66, %v98
    %v101 = vld [vmem:[#allocation5] sm:$0x1]
    %v103 = vperm.slane %v101, 0
    %v105 = vmul.f32 %v99, %v103
    %v106 = vmul.f32 %v100, %v103
    %v107 = vld [vmem:[%s2] sm:$0x1]
    %v109 = vperm.slane %v107, 0
    %v111 = vadd.f32 %v105, %v109
    %v112 = vadd.f32 %v106, %v109
    %v113 = vpack.c.bf16 %v111, %v111
    %v114 = vpack.c.bf16 %v112, %v112
    %vm115 = vcmask 257024
    %116 = vst.msk [vmem:[#allocation7] sm:$0xf] %vm115, %v113
    %117 = vst.msk [vmem:[#allocation7 + $0x4] sm:$0xf] %vm115, %v114
    // Predicated region
    $region22: #{tpu_custom_call.1} parent=1 // pred_check
      _
    $region23: #{tpu_custom_call.1} parent=1 // pred_check_branch
      %119 = sbr.rel (0) target = $region25
    $region24: #{tpu_custom_call.1} parent=1 // pred_region
      %121 = vsyncadd [#allocation4], 0
      %s122 = sshll.u32 [#allocation7], 4
      %s123 = int_to_ptr.vmem [resolvable:$true] %s122
      %s124 = sshll.u32 %s3, 4
      %s125 = int_to_ptr.hbm [resolvable:$true] %s124
      %130 = dma.vmem_to_hbm [thread:$0]  %s123, 128, %s125, [#allocation4], 64, 64, 4
    $region25: #{tpu_custom_call.1} parent=1 // pred_fallthru
      _
    // Predicated region
    $region26: #{tpu_custom_call.1} parent=1 // pred_check
      _
    $region27: #{tpu_custom_call.1} parent=1 // pred_check_branch
      %132 = sbr.rel (0) target = $region29
    $region28: #{tpu_custom_call.1} parent=1 // pred_region
      %134 = dma.done [#allocation4], 128
    $region29: #{tpu_custom_call.1} parent=1 // pred_fallthru
      _
    %135 = vsyncpa [#allocation3], 1
    %136 = vsyncpa [#allocation6], 1
    %137 = vsyncpa [#allocation4], 1

</llo_original>
